<compile_context>
chip_gen: v7x
topology: tpu7x:2x2x1
jax: 0.10.0
libtpu: 0.0.40
codegen_flags: <defaults>
</compile_context>

<pallas_src>
import jax
import jax.numpy as jnp
from jax.experimental import pallas as pl
from jax.experimental.pallas import tpu as pltpu

DILATIONS = (1, 2, 4, 8)                      # module default
RECEPTIVE_FIELD = sum(DILATIONS) + 1          # = 16
_LANE = 128


def _make_kernel(layer_dims, dilations):
    """Build a kernel body for a static ((cout, cin), ...) / dilation config."""
    n_layers = len(layer_dims)
    w_sizes = [co * ci * 2 for co, ci in layer_dims]
    w_off = [sum(w_sizes[:l]) for l in range(n_layers)]
    b_base = sum(w_sizes)
    b_off = [b_base + sum(co for co, _ in layer_dims[:l]) for l in range(n_layers)]

    def kernel(p_ref, x_ref, o_ref):
        # p_ref: (n_params,) f32 in SMEM  (all weights, then all biases)
        # x_ref: (C, RF, TB)  in VMEM     (time on sublanes, batch on lanes)
        # o_ref: (1, TB) f32  in VMEM     (lane-dense output slab)
        num_in, length, _ = x_ref.shape
        chans = [x_ref[i].astype(jnp.float32) for i in range(num_in)]

        for l in range(n_layers):
            cout, cin = layer_dims[l]
            d = dilations[l]
            length_out = length - d
            # Hoisted shifted views: built once per (layer, input channel) and
            # reused for every output channel (sublane-offset slices are XLU
            # work and are not reliably CSE'd).
            lo = [chans[i][:length_out] for i in range(cin)]
            hi = [chans[i][d:length] for i in range(cin)]
            new_chans = []
            for o in range(cout):
                acc = None
                for i in range(cin):
                    base = w_off[l] + (o * cin + i) * 2
                    # y[t] = w0 * x[t] + w1 * x[t + d]   (VALID dilated conv, k=2)
                    term = p_ref[base] * lo[i] + p_ref[base + 1] * hi[i]
                    acc = term if acc is None else acc + term
                acc = acc + p_ref[b_off[l] + o]
                if l < n_layers - 1:                  # ReLU on all but the last conv
                    acc = jnp.maximum(acc, 0.0)
                new_chans.append(acc)
            chans, length = new_chans, length_out

        # Final layer: 1 output channel, length 1  ->  (1, TB).
        o_ref[...] = chans[0].astype(o_ref.dtype)

    return kernel


def _pick_batch_tiling(batch, batch_tile):
    """Lane-aligned batch tile with bounded padding; >=2 blocks when possible."""
    b128 = pl.cdiv(batch, _LANE) * _LANE              # pad batch only to lane width
    cap = max(_LANE, (min(batch_tile, b128) // _LANE) * _LANE)
    n_tiles = pl.cdiv(b128, cap)
    if n_tiles == 1 and b128 >= 2 * _LANE:
        n_tiles = 2                                   # let both v7x TensorCores engage
    tb = pl.cdiv(b128 // _LANE, n_tiles) * _LANE      # near-even, lane-aligned split
    n_tiles = pl.cdiv(b128, tb)
    return tb, n_tiles * tb


def dilated_net_forward(x, params, *, dilations=DILATIONS, batch_tile=4096):
    """x: (B, num_inputs, n_steps_past) -> (B, 1) float32 (matches PyTorch).

    params: list of (weight (cout, cin, 2), bias (cout,)) per conv layer.
    Call under jax.jit so wrapper-side slice/transpose/pad fuse into one copy.
    """
    B, C, T = x.shape
    dilations = tuple(int(d) for d in dilations)
    layer_dims = tuple((int(w.shape[0]), int(w.shape[1])) for (w, _) in params)

    # Static-config guards (avoid silently-wrong results on odd configs).
    assert len(params) == len(dilations), "need one dilation per conv layer"
    for (w, b) in params:
        assert w.ndim == 3 and w.shape[2] == 2, "kernel assumes Conv1d kernel_size=2"
        assert b.shape == (w.shape[0],)
    assert layer_dims[0][1] == C, "conv1 in_channels must match input channels"
    for l in range(1, len(layer_dims)):
        assert layer_dims[l][1] == layer_dims[l - 1][0], "channel chain mismatch"
    assert layer_dims[-1][0] == 1, "final conv must have a single output channel"

    rf = sum(dilations) + 1                           # receptive field of the stack

    # Feed bf16 activations through untouched (halves input HBM traffic).
    if x.dtype not in (jnp.float32, jnp.bfloat16):
        x = x.astype(jnp.float32)

    # Only the trailing `rf` timesteps influence the output.
    if T < rf:                                        # mirrors F.pad(x, [pad, 0])
        x = jnp.pad(x, ((0, 0), (0, 0), (rf - T, 0)))
    elif T > rf:
        x = x[:, :, T - rf:]

    tb, b_pad = _pick_batch_tiling(B, batch_tile)

    # (B, C, rf) -> (C, rf, B_pad): channels leading, time on sublanes, batch on
    # lanes.  Under jit the slice/transpose/pad fuse into a single copy.
    # NOTE: if the producer can emit activations already in (C, T, B) batch-minor
    # layout, pass that straight in and this transpose disappears entirely.
    x_cl = jnp.transpose(x, (1, 2, 0))
    if b_pad != B:
        x_cl = jnp.pad(x_cl, ((0, 0), (0, 0), (0, b_pad - B)))

    # One flat f32 param vector: all weights (layer order), then all biases.
    p_flat = jnp.concatenate(
        [w.reshape(-1).astype(jnp.float32) for (w, _) in params]
        + [b.reshape(-1).astype(jnp.float32) for (_, b) in params])

    kernel = _make_kernel(layer_dims, dilations)

    out = pl.pallas_call(
        kernel,
        out_shape=jax.ShapeDtypeStruct((1, b_pad), jnp.float32),
        grid=(b_pad // tb,),
        in_specs=[
            # Tiny scalar table: keep the whole thing resident in SMEM.
            pl.BlockSpec(memory_space=pltpu.MemorySpace.SMEM),
            # 1 MiB-class lane-dense input blocks, auto double-buffered.
            # NOTE: add pipeline_mode=pl.Buffered(3) here only if a trace still
            # shows exposed per-step DMA gaps at large tiles.
            pl.BlockSpec((C, rf, tb), lambda b: (0, 0, b)),
        ],
        out_specs=pl.BlockSpec((1, tb), lambda b: (0, b)),
        compiler_params=pltpu.CompilerParams(
            dimension_semantics=("parallel",)),
    )(p_flat, x_cl)

    return out[0, :B].reshape(B, 1)


def init_params(key, num_inputs=4, h1=2, h2=3, h3=1):
    """Uniform(+/- 1/sqrt(fan_in)) init matching PyTorch Conv1d defaults."""
    dims = [(h1, num_inputs), (h2, h1), (h3, h2), (1, h3)]
    params = []
    for cout, cin in dims:
        key, kw, kb = jax.random.split(key, 3)
        bound = 1.0 / ((cin * 2) ** 0.5)              # fan_in = cin * kernel_size
        w = jax.random.uniform(kw, (cout, cin, 2), jnp.float32, -bound, bound)
        b = jax.random.uniform(kb, (cout,), jnp.float32, -bound, bound)
        params.append((w, b))
    return params


def reference_forward(x, params, dilations=DILATIONS):
    """Pure-JAX reference (lax dilated conv) mirroring the PyTorch forward."""
    rf = sum(dilations) + 1
    pad = max(rf - x.shape[2], 0)
    x = jnp.pad(x.astype(jnp.float32), ((0, 0), (0, 0), (pad, 0)))
    n = len(params)
    for li, ((w, b), d) in enumerate(zip(params, dilations)):
        x = jax.lax.conv_general_dilated(
            x, w.astype(jnp.float32), window_strides=(1,), padding='VALID',
            rhs_dilation=(d,), dimension_numbers=('NCH', 'OIH', 'NCH'))
        x = x + b[None, :, None]
        if li < n - 1:
            x = jnp.maximum(x, 0.0)                   # ReLU on conv1..conv3 only
    return x[:, :, -1]                                # (B, 1)


if __name__ == "__main__":
    key = jax.random.PRNGKey(0)
    key, kx, kp = jax.random.split(key, 3)

    B, num_inputs, n_steps_past = 2, 4, 32            # module defaults, small batch
    x = jax.random.normal(kx, (B, num_inputs, n_steps_past), jnp.float32)
    params = init_params(kp, num_inputs=num_inputs, h1=2, h2=3, h3=1)

    fwd = jax.jit(dilated_net_forward)                # fuse wrapper-side copies
    out = jax.block_until_ready(fwd(x, params))
    ref = reference_forward(x, params)

    assert out.shape == (B, 1), out.shape
    assert jnp.allclose(out, ref, atol=1e-5, rtol=1e-5), (out, ref)

    print("KERNEL_OK")
</pallas_src>

<mosaic_0001>
module attributes {stable_mosaic.version = 11 : i64} {
  func.func @kernel(%arg0: i32, %arg1: memref<43xf32, #tpu.memory_space<smem>>, %arg2: memref<4x16x128xf32, #tpu.memory_space<vmem>>, %arg3: memref<1x128xf32, #tpu.memory_space<vmem>>) attributes {dimension_semantics = [#tpu.dimension_semantics<parallel>], iteration_bounds = array<i64: 1>, scalar_prefetch = 0 : i64, scratch_operands = 0 : i64, tpu.core_type = #tpu.core_type<tc>, window_params = [{transform_indices = @transform_0, window_bounds = array<i64: 43>}, {transform_indices = @transform_1, window_bounds = array<i64: 4, 16, 128>}, {transform_indices = @transform_2, window_bounds = array<i64: 1, 128>}]} {
    %c0 = arith.constant 0 : index
    %c0_0 = arith.constant 0 : index
    %c0_1 = arith.constant 0 : index
    %0 = vector.load %arg2[%c0, %c0_0, %c0_1] : memref<4x16x128xf32, #tpu.memory_space<vmem>>, vector<1x16x128xf32>
    %1 = vector.shape_cast %0 : vector<1x16x128xf32> to vector<16x128xf32>
    %c1 = arith.constant 1 : index
    %c0_2 = arith.constant 0 : index
    %c0_3 = arith.constant 0 : index
    %2 = vector.load %arg2[%c1, %c0_2, %c0_3] : memref<4x16x128xf32, #tpu.memory_space<vmem>>, vector<1x16x128xf32>
    %3 = vector.shape_cast %2 : vector<1x16x128xf32> to vector<16x128xf32>
    %c2 = arith.constant 2 : index
    %c0_4 = arith.constant 0 : index
    %c0_5 = arith.constant 0 : index
    %4 = vector.load %arg2[%c2, %c0_4, %c0_5] : memref<4x16x128xf32, #tpu.memory_space<vmem>>, vector<1x16x128xf32>
    %5 = vector.shape_cast %4 : vector<1x16x128xf32> to vector<16x128xf32>
    %c3 = arith.constant 3 : index
    %c0_6 = arith.constant 0 : index
    %c0_7 = arith.constant 0 : index
    %6 = vector.load %arg2[%c3, %c0_6, %c0_7] : memref<4x16x128xf32, #tpu.memory_space<vmem>>, vector<1x16x128xf32>
    %7 = vector.shape_cast %6 : vector<1x16x128xf32> to vector<16x128xf32>
    %8 = vector.extract_strided_slice %1 {offsets = [0, 0], sizes = [15, 128], strides = [1, 1]} : vector<16x128xf32> to vector<15x128xf32>
    %9 = vector.extract_strided_slice %3 {offsets = [0, 0], sizes = [15, 128], strides = [1, 1]} : vector<16x128xf32> to vector<15x128xf32>
    %10 = vector.extract_strided_slice %5 {offsets = [0, 0], sizes = [15, 128], strides = [1, 1]} : vector<16x128xf32> to vector<15x128xf32>
    %11 = vector.extract_strided_slice %7 {offsets = [0, 0], sizes = [15, 128], strides = [1, 1]} : vector<16x128xf32> to vector<15x128xf32>
    %12 = vector.extract_strided_slice %1 {offsets = [1, 0], sizes = [15, 128], strides = [1, 1]} : vector<16x128xf32> to vector<15x128xf32>
    %13 = vector.extract_strided_slice %3 {offsets = [1, 0], sizes = [15, 128], strides = [1, 1]} : vector<16x128xf32> to vector<15x128xf32>
    %14 = vector.extract_strided_slice %5 {offsets = [1, 0], sizes = [15, 128], strides = [1, 1]} : vector<16x128xf32> to vector<15x128xf32>
    %15 = vector.extract_strided_slice %7 {offsets = [1, 0], sizes = [15, 128], strides = [1, 1]} : vector<16x128xf32> to vector<15x128xf32>
    %c0_8 = arith.constant 0 : index
    %16 = memref.load %arg1[%c0_8] : memref<43xf32, #tpu.memory_space<smem>>
    %17 = vector.broadcast %16 : f32 to vector<15x128xf32>
    %18 = arith.mulf %17, %8 : vector<15x128xf32>
    %c1_9 = arith.constant 1 : index
    %19 = memref.load %arg1[%c1_9] : memref<43xf32, #tpu.memory_space<smem>>
    %20 = vector.broadcast %19 : f32 to vector<15x128xf32>
    %21 = arith.mulf %20, %12 : vector<15x128xf32>
    %22 = arith.addf %18, %21 : vector<15x128xf32>
    %c2_10 = arith.constant 2 : index
    %23 = memref.load %arg1[%c2_10] : memref<43xf32, #tpu.memory_space<smem>>
    %24 = vector.broadcast %23 : f32 to vector<15x128xf32>
    %25 = arith.mulf %24, %9 : vector<15x128xf32>
    %c3_11 = arith.constant 3 : index
    %26 = memref.load %arg1[%c3_11] : memref<43xf32, #tpu.memory_space<smem>>
    %27 = vector.broadcast %26 : f32 to vector<15x128xf32>
    %28 = arith.mulf %27, %13 : vector<15x128xf32>
    %29 = arith.addf %25, %28 : vector<15x128xf32>
    %30 = arith.addf %22, %29 : vector<15x128xf32>
    %c4 = arith.constant 4 : index
    %31 = memref.load %arg1[%c4] : memref<43xf32, #tpu.memory_space<smem>>
    %32 = vector.broadcast %31 : f32 to vector<15x128xf32>
    %33 = arith.mulf %32, %10 : vector<15x128xf32>
    %c5 = arith.constant 5 : index
    %34 = memref.load %arg1[%c5] : memref<43xf32, #tpu.memory_space<smem>>
    %35 = vector.broadcast %34 : f32 to vector<15x128xf32>
    %36 = arith.mulf %35, %14 : vector<15x128xf32>
    %37 = arith.addf %33, %36 : vector<15x128xf32>
    %38 = arith.addf %30, %37 : vector<15x128xf32>
    %c6 = arith.constant 6 : index
    %39 = memref.load %arg1[%c6] : memref<43xf32, #tpu.memory_space<smem>>
    %40 = vector.broadcast %39 : f32 to vector<15x128xf32>
    %41 = arith.mulf %40, %11 : vector<15x128xf32>
    %c7 = arith.constant 7 : index
    %42 = memref.load %arg1[%c7] : memref<43xf32, #tpu.memory_space<smem>>
    %43 = vector.broadcast %42 : f32 to vector<15x128xf32>
    %44 = arith.mulf %43, %15 : vector<15x128xf32>
    %45 = arith.addf %41, %44 : vector<15x128xf32>
    %46 = arith.addf %38, %45 : vector<15x128xf32>
    %c36 = arith.constant 36 : index
    %47 = memref.load %arg1[%c36] : memref<43xf32, #tpu.memory_space<smem>>
    %48 = vector.broadcast %47 : f32 to vector<15x128xf32>
    %49 = arith.addf %46, %48 : vector<15x128xf32>
    %cst = arith.constant 0.000000e+00 : f32
    %50 = vector.broadcast %cst : f32 to vector<15x128xf32>
    %51 = arith.maximumf %49, %50 : vector<15x128xf32>
    %c8 = arith.constant 8 : index
    %52 = memref.load %arg1[%c8] : memref<43xf32, #tpu.memory_space<smem>>
    %53 = vector.broadcast %52 : f32 to vector<15x128xf32>
    %54 = arith.mulf %53, %8 : vector<15x128xf32>
    %c9 = arith.constant 9 : index
    %55 = memref.load %arg1[%c9] : memref<43xf32, #tpu.memory_space<smem>>
    %56 = vector.broadcast %55 : f32 to vector<15x128xf32>
    %57 = arith.mulf %56, %12 : vector<15x128xf32>
    %58 = arith.addf %54, %57 : vector<15x128xf32>
    %c10 = arith.constant 10 : index
    %59 = memref.load %arg1[%c10] : memref<43xf32, #tpu.memory_space<smem>>
    %60 = vector.broadcast %59 : f32 to vector<15x128xf32>
    %61 = arith.mulf %60, %9 : vector<15x128xf32>
    %c11 = arith.constant 11 : index
    %62 = memref.load %arg1[%c11] : memref<43xf32, #tpu.memory_space<smem>>
    %63 = vector.broadcast %62 : f32 to vector<15x128xf32>
    %64 = arith.mulf %63, %13 : vector<15x128xf32>
    %65 = arith.addf %61, %64 : vector<15x128xf32>
    %66 = arith.addf %58, %65 : vector<15x128xf32>
    %c12 = arith.constant 12 : index
    %67 = memref.load %arg1[%c12] : memref<43xf32, #tpu.memory_space<smem>>
    %68 = vector.broadcast %67 : f32 to vector<15x128xf32>
    %69 = arith.mulf %68, %10 : vector<15x128xf32>
    %c13 = arith.constant 13 : index
    %70 = memref.load %arg1[%c13] : memref<43xf32, #tpu.memory_space<smem>>
    %71 = vector.broadcast %70 : f32 to vector<15x128xf32>
    %72 = arith.mulf %71, %14 : vector<15x128xf32>
    %73 = arith.addf %69, %72 : vector<15x128xf32>
    %74 = arith.addf %66, %73 : vector<15x128xf32>
    %c14 = arith.constant 14 : index
    %75 = memref.load %arg1[%c14] : memref<43xf32, #tpu.memory_space<smem>>
    %76 = vector.broadcast %75 : f32 to vector<15x128xf32>
    %77 = arith.mulf %76, %11 : vector<15x128xf32>
    %c15 = arith.constant 15 : index
    %78 = memref.load %arg1[%c15] : memref<43xf32, #tpu.memory_space<smem>>
    %79 = vector.broadcast %78 : f32 to vector<15x128xf32>
    %80 = arith.mulf %79, %15 : vector<15x128xf32>
    %81 = arith.addf %77, %80 : vector<15x128xf32>
    %82 = arith.addf %74, %81 : vector<15x128xf32>
    %c37 = arith.constant 37 : index
    %83 = memref.load %arg1[%c37] : memref<43xf32, #tpu.memory_space<smem>>
    %84 = vector.broadcast %83 : f32 to vector<15x128xf32>
    %85 = arith.addf %82, %84 : vector<15x128xf32>
    %cst_12 = arith.constant 0.000000e+00 : f32
    %86 = vector.broadcast %cst_12 : f32 to vector<15x128xf32>
    %87 = arith.maximumf %85, %86 : vector<15x128xf32>
    %88 = vector.extract_strided_slice %51 {offsets = [0, 0], sizes = [13, 128], strides = [1, 1]} : vector<15x128xf32> to vector<13x128xf32>
    %89 = vector.extract_strided_slice %87 {offsets = [0, 0], sizes = [13, 128], strides = [1, 1]} : vector<15x128xf32> to vector<13x128xf32>
    %90 = vector.extract_strided_slice %51 {offsets = [2, 0], sizes = [13, 128], strides = [1, 1]} : vector<15x128xf32> to vector<13x128xf32>
    %91 = vector.extract_strided_slice %87 {offsets = [2, 0], sizes = [13, 128], strides = [1, 1]} : vector<15x128xf32> to vector<13x128xf32>
    %c16 = arith.constant 16 : index
    %92 = memref.load %arg1[%c16] : memref<43xf32, #tpu.memory_space<smem>>
    %93 = vector.broadcast %92 : f32 to vector<13x128xf32>
    %94 = arith.mulf %93, %88 : vector<13x128xf32>
    %c17 = arith.constant 17 : index
    %95 = memref.load %arg1[%c17] : memref<43xf32, #tpu.memory_space<smem>>
    %96 = vector.broadcast %95 : f32 to vector<13x128xf32>
    %97 = arith.mulf %96, %90 : vector<13x128xf32>
    %98 = arith.addf %94, %97 : vector<13x128xf32>
    %c18 = arith.constant 18 : index
    %99 = memref.load %arg1[%c18] : memref<43xf32, #tpu.memory_space<smem>>
    %100 = vector.broadcast %99 : f32 to vector<13x128xf32>
    %101 = arith.mulf %100, %89 : vector<13x128xf32>
    %c19 = arith.constant 19 : index
    %102 = memref.load %arg1[%c19] : memref<43xf32, #tpu.memory_space<smem>>
    %103 = vector.broadcast %102 : f32 to vector<13x128xf32>
    %104 = arith.mulf %103, %91 : vector<13x128xf32>
    %105 = arith.addf %101, %104 : vector<13x128xf32>
    %106 = arith.addf %98, %105 : vector<13x128xf32>
    %c38 = arith.constant 38 : index
    %107 = memref.load %arg1[%c38] : memref<43xf32, #tpu.memory_space<smem>>
    %108 = vector.broadcast %107 : f32 to vector<13x128xf32>
    %109 = arith.addf %106, %108 : vector<13x128xf32>
    %cst_13 = arith.constant 0.000000e+00 : f32
    %110 = vector.broadcast %cst_13 : f32 to vector<13x128xf32>
    %111 = arith.maximumf %109, %110 : vector<13x128xf32>
    %c20 = arith.constant 20 : index
    %112 = memref.load %arg1[%c20] : memref<43xf32, #tpu.memory_space<smem>>
    %113 = vector.broadcast %112 : f32 to vector<13x128xf32>
    %114 = arith.mulf %113, %88 : vector<13x128xf32>
    %c21 = arith.constant 21 : index
    %115 = memref.load %arg1[%c21] : memref<43xf32, #tpu.memory_space<smem>>
    %116 = vector.broadcast %115 : f32 to vector<13x128xf32>
    %117 = arith.mulf %116, %90 : vector<13x128xf32>
    %118 = arith.addf %114, %117 : vector<13x128xf32>
    %c22 = arith.constant 22 : index
    %119 = memref.load %arg1[%c22] : memref<43xf32, #tpu.memory_space<smem>>
    %120 = vector.broadcast %119 : f32 to vector<13x128xf32>
    %121 = arith.mulf %120, %89 : vector<13x128xf32>
    %c23 = arith.constant 23 : index
    %122 = memref.load %arg1[%c23] : memref<43xf32, #tpu.memory_space<smem>>
    %123 = vector.broadcast %122 : f32 to vector<13x128xf32>
    %124 = arith.mulf %123, %91 : vector<13x128xf32>
    %125 = arith.addf %121, %124 : vector<13x128xf32>
    %126 = arith.addf %118, %125 : vector<13x128xf32>
    %c39 = arith.constant 39 : index
    %127 = memref.load %arg1[%c39] : memref<43xf32, #tpu.memory_space<smem>>
    %128 = vector.broadcast %127 : f32 to vector<13x128xf32>
    %129 = arith.addf %126, %128 : vector<13x128xf32>
    %cst_14 = arith.constant 0.000000e+00 : f32
    %130 = vector.broadcast %cst_14 : f32 to vector<13x128xf32>
    %131 = arith.maximumf %129, %130 : vector<13x128xf32>
    %c24 = arith.constant 24 : index
    %132 = memref.load %arg1[%c24] : memref<43xf32, #tpu.memory_space<smem>>
    %133 = vector.broadcast %132 : f32 to vector<13x128xf32>
    %134 = arith.mulf %133, %88 : vector<13x128xf32>
    %c25 = arith.constant 25 : index
    %135 = memref.load %arg1[%c25] : memref<43xf32, #tpu.memory_space<smem>>
    %136 = vector.broadcast %135 : f32 to vector<13x128xf32>
    %137 = arith.mulf %136, %90 : vector<13x128xf32>
    %138 = arith.addf %134, %137 : vector<13x128xf32>
    %c26 = arith.constant 26 : index
    %139 = memref.load %arg1[%c26] : memref<43xf32, #tpu.memory_space<smem>>
    %140 = vector.broadcast %139 : f32 to vector<13x128xf32>
    %141 = arith.mulf %140, %89 : vector<13x128xf32>
    %c27 = arith.constant 27 : index
    %142 = memref.load %arg1[%c27] : memref<43xf32, #tpu.memory_space<smem>>
    %143 = vector.broadcast %142 : f32 to vector<13x128xf32>
    %144 = arith.mulf %143, %91 : vector<13x128xf32>
    %145 = arith.addf %141, %144 : vector<13x128xf32>
    %146 = arith.addf %138, %145 : vector<13x128xf32>
    %c40 = arith.constant 40 : index
    %147 = memref.load %arg1[%c40] : memref<43xf32, #tpu.memory_space<smem>>
    %148 = vector.broadcast %147 : f32 to vector<13x128xf32>
    %149 = arith.addf %146, %148 : vector<13x128xf32>
    %cst_15 = arith.constant 0.000000e+00 : f32
    %150 = vector.broadcast %cst_15 : f32 to vector<13x128xf32>
    %151 = arith.maximumf %149, %150 : vector<13x128xf32>
    %152 = vector.extract_strided_slice %111 {offsets = [0, 0], sizes = [9, 128], strides = [1, 1]} : vector<13x128xf32> to vector<9x128xf32>
    %153 = vector.extract_strided_slice %131 {offsets = [0, 0], sizes = [9, 128], strides = [1, 1]} : vector<13x128xf32> to vector<9x128xf32>
    %154 = vector.extract_strided_slice %151 {offsets = [0, 0], sizes = [9, 128], strides = [1, 1]} : vector<13x128xf32> to vector<9x128xf32>
    %155 = vector.extract_strided_slice %111 {offsets = [4, 0], sizes = [9, 128], strides = [1, 1]} : vector<13x128xf32> to vector<9x128xf32>
    %156 = vector.extract_strided_slice %131 {offsets = [4, 0], sizes = [9, 128], strides = [1, 1]} : vector<13x128xf32> to vector<9x128xf32>
    %157 = vector.extract_strided_slice %151 {offsets = [4, 0], sizes = [9, 128], strides = [1, 1]} : vector<13x128xf32> to vector<9x128xf32>
    %c28 = arith.constant 28 : index
    %158 = memref.load %arg1[%c28] : memref<43xf32, #tpu.memory_space<smem>>
    %159 = vector.broadcast %158 : f32 to vector<9x128xf32>
    %160 = arith.mulf %159, %152 : vector<9x128xf32>
    %c29 = arith.constant 29 : index
    %161 = memref.load %arg1[%c29] : memref<43xf32, #tpu.memory_space<smem>>
    %162 = vector.broadcast %161 : f32 to vector<9x128xf32>
    %163 = arith.mulf %162, %155 : vector<9x128xf32>
    %164 = arith.addf %160, %163 : vector<9x128xf32>
    %c30 = arith.constant 30 : index
    %165 = memref.load %arg1[%c30] : memref<43xf32, #tpu.memory_space<smem>>
    %166 = vector.broadcast %165 : f32 to vector<9x128xf32>
    %167 = arith.mulf %166, %153 : vector<9x128xf32>
    %c31 = arith.constant 31 : index
    %168 = memref.load %arg1[%c31] : memref<43xf32, #tpu.memory_space<smem>>
    %169 = vector.broadcast %168 : f32 to vector<9x128xf32>
    %170 = arith.mulf %169, %156 : vector<9x128xf32>
    %171 = arith.addf %167, %170 : vector<9x128xf32>
    %172 = arith.addf %164, %171 : vector<9x128xf32>
    %c32 = arith.constant 32 : index
    %173 = memref.load %arg1[%c32] : memref<43xf32, #tpu.memory_space<smem>>
    %174 = vector.broadcast %173 : f32 to vector<9x128xf32>
    %175 = arith.mulf %174, %154 : vector<9x128xf32>
    %c33 = arith.constant 33 : index
    %176 = memref.load %arg1[%c33] : memref<43xf32, #tpu.memory_space<smem>>
    %177 = vector.broadcast %176 : f32 to vector<9x128xf32>
    %178 = arith.mulf %177, %157 : vector<9x128xf32>
    %179 = arith.addf %175, %178 : vector<9x128xf32>
    %180 = arith.addf %172, %179 : vector<9x128xf32>
    %c41 = arith.constant 41 : index
    %181 = memref.load %arg1[%c41] : memref<43xf32, #tpu.memory_space<smem>>
    %182 = vector.broadcast %181 : f32 to vector<9x128xf32>
    %183 = arith.addf %180, %182 : vector<9x128xf32>
    %cst_16 = arith.constant 0.000000e+00 : f32
    %184 = vector.broadcast %cst_16 : f32 to vector<9x128xf32>
    %185 = arith.maximumf %183, %184 : vector<9x128xf32>
    %186 = vector.extract_strided_slice %185 {offsets = [0, 0], sizes = [1, 128], strides = [1, 1]} : vector<9x128xf32> to vector<1x128xf32>
    %187 = vector.extract_strided_slice %185 {offsets = [8, 0], sizes = [1, 128], strides = [1, 1]} : vector<9x128xf32> to vector<1x128xf32>
    %c34 = arith.constant 34 : index
    %188 = memref.load %arg1[%c34] : memref<43xf32, #tpu.memory_space<smem>>
    %189 = vector.broadcast %188 : f32 to vector<1x128xf32>
    %190 = arith.mulf %189, %186 : vector<1x128xf32>
    %c35 = arith.constant 35 : index
    %191 = memref.load %arg1[%c35] : memref<43xf32, #tpu.memory_space<smem>>
    %192 = vector.broadcast %191 : f32 to vector<1x128xf32>
    %193 = arith.mulf %192, %187 : vector<1x128xf32>
    %194 = arith.addf %190, %193 : vector<1x128xf32>
    %c42 = arith.constant 42 : index
    %195 = memref.load %arg1[%c42] : memref<43xf32, #tpu.memory_space<smem>>
    %196 = vector.broadcast %195 : f32 to vector<1x128xf32>
    %197 = arith.addf %194, %196 : vector<1x128xf32>
    %c0_17 = arith.constant 0 : index
    %c0_18 = arith.constant 0 : index
    %198 = vector.load %arg3[%c0_17, %c0_18] : memref<1x128xf32, #tpu.memory_space<vmem>>, vector<1x128xf32>
    tpu.vector_store %arg3[%c0_17, %c0_18], %197 {strides = array<i32>} : memref<1x128xf32, #tpu.memory_space<vmem>>, vector<1x128xf32>,
    return
  }
  func.func @transform_0(%arg0: i32) -> i32 {
    %c0_i32 = arith.constant 0 : i32
    %c0_i32_0 = arith.constant 0 : i32
    return %c0_i32 : i32
  }
  func.func @transform_1(%arg0: i32) -> (i32, i32, i32) {
    %c0_i32 = arith.constant 0 : i32
    %c0_i32_0 = arith.constant 0 : i32
    %c0_i32_1 = arith.constant 0 : i32
    return %c0_i32, %c0_i32_0, %arg0 : i32, i32, i32
  }
  func.func @transform_2(%arg0: i32) -> (i32, i32) {
    %c0_i32 = arith.constant 0 : i32
    %c0_i32_0 = arith.constant 0 : i32
    return %c0_i32, %arg0 : i32, i32
  }
}

</mosaic_0001>

<llo_original>
// kernel: dilated_net_forward.1
$region0: #{dilated_net_forward.1}
  #allocation0 [shape = 'u32[]', space=smem, size = 0x4, offset = 0x4, fixed_abs, tag = 'smem constant byte address 0x4 - core index']
  #allocation1 [shape = 'u32[144,128]{1,0:T(1,128)}', space=vmem, size = 0x12000, scoped, tag = 'internal scratch']
  %s0 = inlined_call_operand.vmem [shape: f32[43], index: 0, kind: input, shape index: {}]
  %s1 = inlined_call_operand.vmem [shape: f32[4,16,128], index: 1, kind: input, shape index: {}]
  %s2 = inlined_call_operand.vmem [shape: f32[1,128], index: 2, kind: output, shape index: {}]
  %s3 = sld [smem:[#allocation0]]
  $region22: #{dilated_net_forward.1} parent=0
    _
  %s5 = ssub.s32 1, %s3
  %s6 = scalar_select 0, %s5, %s3
  $region1: #{dilated_net_forward.1} parent=0
    #allocation2 [shape = 'u8[512]{0}', space=smem, size = 0x200, scoped, tag = 'input window, operand 0, single buffered']
    #allocation3 [shape = 's32[1]{0}', space=sflag, size = 0x4, scoped, tag = 'scoped memory for dilated_net_forward.1']
    %7 = vsyncpa [#allocation3], 0
    // Predicated region
    $region2: #{dilated_net_forward.1} parent=1 // pred_check
      _
    $region3: #{dilated_net_forward.1} parent=1 // pred_check_branch
      %9 = sbr.rel (0) target = $region5
    $region4: #{dilated_net_forward.1} parent=1 // pred_region
      %s11 = ssub.s32 16, 16
      %12 = vsyncadd [#allocation3], %s11
      %s14 = sshll.u32 %s0, 4
      %s15 = int_to_ptr.vmem [resolvable:$true] %s14
      %17 = dma.vmem_to_smem %s15, 16, [#allocation2], [#allocation3]
    $region5: #{dilated_net_forward.1} parent=1 // pred_fallthru
      _
    // Predicated region
    $region6: #{dilated_net_forward.1} parent=1 // pred_check
      _
    $region7: #{dilated_net_forward.1} parent=1 // pred_check_branch
      %19 = sbr.rel (0) target = $region9
    $region8: #{dilated_net_forward.1} parent=1 // pred_region
      _
    $region9: #{dilated_net_forward.1} parent=1 // pred_fallthru
      _
    // Predicated region
    $region10: #{dilated_net_forward.1} parent=1 // pred_check
      _
    $region11: #{dilated_net_forward.1} parent=1 // pred_check_branch
      %21 = sbr.rel (0) target = $region13
    $region12: #{dilated_net_forward.1} parent=1 // pred_region
      %22 = dma.done [#allocation3], 16
    $region13: #{dilated_net_forward.1} parent=1 // pred_fallthru
      _
    %23 = sfence
    %v24 = vld [vmem:[%s1] sm:$0xff]
    %v25 = vld [vmem:[%s1 + $0x8] sm:$0xff]
    %s26 = scalar_lea.vmem %s1, 16
    %v27 = vld [vmem:[%s26] sm:$0xff]
    %v28 = vld [vmem:[%s26 + $0x8] sm:$0xff]
    %s29 = scalar_lea.vmem %s1, 32
    %v30 = vld [vmem:[%s29] sm:$0xff]
    %v31 = vld [vmem:[%s29 + $0x8] sm:$0xff]
    %s32 = scalar_lea.vmem %s1, 48
    %v33 = vld [vmem:[%s32] sm:$0xff]
    %v34 = vld [vmem:[%s32 + $0x8] sm:$0xff]
    %s35 = sld [smem:[#allocation2]]
    %v36 = vstv %s35
    %v37 = vmul.f32 %v36, %v24
    %v38 = vmul.f32 %v36, %v25
    %s39 = sld [smem:[#allocation2 + $0x1]]
    %v40 = vstv %s39
    %v41 = vmul.f32 %v40, %v24
    %v42 = vmul.f32 %v40, %v25
    %vm45 = vcmask 1046528
    %v46 = vrot.slane %v41, 1
    %v47 = vrot.slane %v42, 1
    %v48 = vsel %vm45, %v46, %v47
    %v51 = vadd.f32 %v37, %v48
    %v52 = vadd.f32 %v38, %v47
    %s53 = sld [smem:[#allocation2 + $0x2]]
    %v54 = vstv %s53
    %v55 = vmul.f32 %v54, %v27
    %v56 = vmul.f32 %v54, %v28
    %s57 = sld [smem:[#allocation2 + $0x3]]
    %v58 = vstv %s57
    %v59 = vmul.f32 %v58, %v27
    %v60 = vmul.f32 %v58, %v28
    %v63 = vrot.slane %v59, 1
    %v64 = vrot.slane %v60, 1
    %v65 = vsel %vm45, %v63, %v64
    %v68 = vadd.f32 %v55, %v65
    %v69 = vadd.f32 %v56, %v64
    %v70 = vadd.f32 %v51, %v68
    %v71 = vadd.f32 %v52, %v69
    %s72 = sld [smem:[#allocation2 + $0x4]]
    %v73 = vstv %s72
    %v74 = vmul.f32 %v73, %v30
    %v75 = vmul.f32 %v73, %v31
    %s76 = sld [smem:[#allocation2 + $0x5]]
    %v77 = vstv %s76
    %v78 = vmul.f32 %v77, %v30
    %v79 = vmul.f32 %v77, %v31
    %v82 = vrot.slane %v78, 1
    %v83 = vrot.slane %v79, 1
    %v84 = vsel %vm45, %v82, %v83
    %v87 = vadd.f32 %v74, %v84
    %v88 = vadd.f32 %v75, %v83
    %v89 = vadd.f32 %v70, %v87
    %v90 = vadd.f32 %v71, %v88
    %s91 = sld [smem:[#allocation2 + $0x6]]
    %v92 = vstv %s91
    %v93 = vmul.f32 %v92, %v33
    %v94 = vmul.f32 %v92, %v34
    %s95 = sld [smem:[#allocation2 + $0x7]]
    %v96 = vstv %s95
    %v97 = vmul.f32 %v96, %v33
    %v98 = vmul.f32 %v96, %v34
    %v101 = vrot.slane %v97, 1
    %v102 = vrot.slane %v98, 1
    %v103 = vsel %vm45, %v101, %v102
    %v106 = vadd.f32 %v93, %v103
    %v107 = vadd.f32 %v94, %v102
    %v108 = vadd.f32 %v89, %v106
    %v109 = vadd.f32 %v90, %v107
    %s110 = sld [smem:[#allocation2 + $0x24]]
    %v111 = vstv %s110
    %v112 = vadd.f32 %v108, %v111
    %v113 = vadd.f32 %v109, %v111
    %v114 = vmax.f32 %v112, 0.0
    %v115 = vmax.f32 %v113, 0.0
    %s116 = sld [smem:[#allocation2 + $0x8]]
    %v117 = vstv %s116
    %v118 = vmul.f32 %v117, %v24
    %v119 = vmul.f32 %v117, %v25
    %s120 = sld [smem:[#allocation2 + $0x9]]
    %v121 = vstv %s120
    %v122 = vmul.f32 %v121, %v24
    %v123 = vmul.f32 %v121, %v25
    %v126 = vrot.slane %v122, 1
    %v127 = vrot.slane %v123, 1
    %v128 = vsel %vm45, %v126, %v127
    %v131 = vadd.f32 %v118, %v128
    %v132 = vadd.f32 %v119, %v127
    %s133 = sld [smem:[#allocation2 + $0xa]]
    %v134 = vstv %s133
    %v135 = vmul.f32 %v134, %v27
    %v136 = vmul.f32 %v134, %v28
    %s137 = sld [smem:[#allocation2 + $0xb]]
    %v138 = vstv %s137
    %v139 = vmul.f32 %v138, %v27
    %v140 = vmul.f32 %v138, %v28
    %v143 = vrot.slane %v139, 1
    %v144 = vrot.slane %v140, 1
    %v145 = vsel %vm45, %v143, %v144
    %v148 = vadd.f32 %v135, %v145
    %v149 = vadd.f32 %v136, %v144
    %v150 = vadd.f32 %v131, %v148
    %v151 = vadd.f32 %v132, %v149
    %s152 = sld [smem:[#allocation2 + $0xc]]
    %v153 = vstv %s152
    %v154 = vmul.f32 %v153, %v30
    %v155 = vmul.f32 %v153, %v31
    %s156 = sld [smem:[#allocation2 + $0xd]]
    %v157 = vstv %s156
    %v158 = vmul.f32 %v157, %v30
    %v159 = vmul.f32 %v157, %v31
    %v162 = vrot.slane %v158, 1
    %v163 = vrot.slane %v159, 1
    %v164 = vsel %vm45, %v162, %v163
    %v167 = vadd.f32 %v154, %v164
    %v168 = vadd.f32 %v155, %v163
    %v169 = vadd.f32 %v150, %v167
    %v170 = vadd.f32 %v151, %v168
    %s171 = sld [smem:[#allocation2 + $0xe]]
    %v172 = vstv %s171
    %v173 = vmul.f32 %v172, %v33
    %v174 = vmul.f32 %v172, %v34
    %s175 = sld [smem:[#allocation2 + $0xf]]
    %v176 = vstv %s175
    %v177 = vmul.f32 %v176, %v33
    %v178 = vmul.f32 %v176, %v34
    %v181 = vrot.slane %v177, 1
    %v182 = vrot.slane %v178, 1
    %v183 = vsel %vm45, %v181, %v182
    %v186 = vadd.f32 %v173, %v183
    %v187 = vadd.f32 %v174, %v182
    %v188 = vadd.f32 %v169, %v186
    %v189 = vadd.f32 %v170, %v187
    %s190 = sld [smem:[#allocation2 + $0x25]]
    %v191 = vstv %s190
    %v192 = vadd.f32 %v188, %v191
    %v193 = vadd.f32 %v189, %v191
    %v194 = vmax.f32 %v192, 0.0
    %v195 = vmax.f32 %v193, 0.0
    %s196 = sld [smem:[#allocation2 + $0x10]]
    %v197 = vstv %s196
    %v198 = vmul.f32 %v197, %v114
    %v199 = vmul.f32 %v197, %v115
    %s200 = sld [smem:[#allocation2 + $0x11]]
    %v201 = vstv %s200
    %v202 = vmul.f32 %v201, %v114
    %v203 = vmul.f32 %v201, %v115
    %vm206 = vcmask 1045504
    %v207 = vrot.slane %v202, 2
    %v208 = vrot.slane %v203, 2
    %v209 = vsel %vm206, %v207, %v208
    %v212 = vadd.f32 %v198, %v209
    %v213 = vadd.f32 %v199, %v208
    %s214 = sld [smem:[#allocation2 + $0x12]]
    %v215 = vstv %s214
    %v216 = vmul.f32 %v215, %v194
    %v217 = vmul.f32 %v215, %v195
    %s218 = sld [smem:[#allocation2 + $0x13]]
    %v219 = vstv %s218
    %v220 = vmul.f32 %v219, %v194
    %v221 = vmul.f32 %v219, %v195
    %v224 = vrot.slane %v220, 2
    %v225 = vrot.slane %v221, 2
    %v226 = vsel %vm206, %v224, %v225
    %v229 = vadd.f32 %v216, %v226
    %v230 = vadd.f32 %v217, %v225
    %v231 = vadd.f32 %v212, %v229
    %v232 = vadd.f32 %v213, %v230
    %s233 = sld [smem:[#allocation2 + $0x26]]
    %v234 = vstv %s233
    %v235 = vadd.f32 %v231, %v234
    %v236 = vadd.f32 %v232, %v234
    %v237 = vmax.f32 %v235, 0.0
    %v238 = vmax.f32 %v236, 0.0
    %s239 = sld [smem:[#allocation2 + $0x14]]
    %v240 = vstv %s239
    %v241 = vmul.f32 %v240, %v114
    %v242 = vmul.f32 %v240, %v115
    %s243 = sld [smem:[#allocation2 + $0x15]]
    %v244 = vstv %s243
    %v245 = vmul.f32 %v244, %v114
    %v246 = vmul.f32 %v244, %v115
    %v249 = vrot.slane %v245, 2
    %v250 = vrot.slane %v246, 2
    %v251 = vsel %vm206, %v249, %v250
    %v254 = vadd.f32 %v241, %v251
    %v255 = vadd.f32 %v242, %v250
    %s256 = sld [smem:[#allocation2 + $0x16]]
    %v257 = vstv %s256
    %v258 = vmul.f32 %v257, %v194
    %v259 = vmul.f32 %v257, %v195
    %s260 = sld [smem:[#allocation2 + $0x17]]
    %v261 = vstv %s260
    %v262 = vmul.f32 %v261, %v194
    %v263 = vmul.f32 %v261, %v195
    %v266 = vrot.slane %v262, 2
    %v267 = vrot.slane %v263, 2
    %v268 = vsel %vm206, %v266, %v267
    %v271 = vadd.f32 %v258, %v268
    %v272 = vadd.f32 %v259, %v267
    %v273 = vadd.f32 %v254, %v271
    %v274 = vadd.f32 %v255, %v272
    %s275 = sld [smem:[#allocation2 + $0x27]]
    %v276 = vstv %s275
    %v277 = vadd.f32 %v273, %v276
    %v278 = vadd.f32 %v274, %v276
    %v279 = vmax.f32 %v277, 0.0
    %v280 = vmax.f32 %v278, 0.0
    %s281 = sld [smem:[#allocation2 + $0x18]]
    %v282 = vstv %s281
    %v283 = vmul.f32 %v282, %v114
    %v284 = vmul.f32 %v282, %v115
    %s285 = sld [smem:[#allocation2 + $0x19]]
    %v286 = vstv %s285
    %v287 = vmul.f32 %v286, %v114
    %v288 = vmul.f32 %v286, %v115
    %v291 = vrot.slane %v287, 2
    %v292 = vrot.slane %v288, 2
    %v293 = vsel %vm206, %v291, %v292
    %v296 = vadd.f32 %v283, %v293
    %v297 = vadd.f32 %v284, %v292
    %s298 = sld [smem:[#allocation2 + $0x1a]]
    %v299 = vstv %s298
    %v300 = vmul.f32 %v299, %v194
    %v301 = vmul.f32 %v299, %v195
    %s302 = sld [smem:[#allocation2 + $0x1b]]
    %v303 = vstv %s302
    %v304 = vmul.f32 %v303, %v194
    %v305 = vmul.f32 %v303, %v195
    %v308 = vrot.slane %v304, 2
    %v309 = vrot.slane %v305, 2
    %v310 = vsel %vm206, %v308, %v309
    %v313 = vadd.f32 %v300, %v310
    %v314 = vadd.f32 %v301, %v309
    %v315 = vadd.f32 %v296, %v313
    %v316 = vadd.f32 %v297, %v314
    %s317 = sld [smem:[#allocation2 + $0x28]]
    %v318 = vstv %s317
    %v319 = vadd.f32 %v315, %v318
    %v320 = vadd.f32 %v316, %v318
    %v321 = vmax.f32 %v319, 0.0
    %v322 = vmax.f32 %v320, 0.0
    %s323 = sld [smem:[#allocation2 + $0x1c]]
    %v324 = vstv %s323
    %v325 = vmul.f32 %v324, %v237
    %v326 = vmul.f32 %v324, %v238
    %s327 = sld [smem:[#allocation2 + $0x1d]]
    %v328 = vstv %s327
    %v329 = vmul.f32 %v328, %v237
    %v330 = vmul.f32 %v328, %v238
    %vm333 = vcmask 1043456
    %v334 = vrot.slane %v329, 4
    %v335 = vrot.slane %v330, 4
    %v336 = vsel %vm333, %v334, %v335
    %v339 = vadd.f32 %v325, %v336
    %v340 = vadd.f32 %v326, %v335
    %s341 = sld [smem:[#allocation2 + $0x1e]]
    %v342 = vstv %s341
    %v343 = vmul.f32 %v342, %v279
    %v344 = vmul.f32 %v342, %v280
    %s345 = sld [smem:[#allocation2 + $0x1f]]
    %v346 = vstv %s345
    %v347 = vmul.f32 %v346, %v279
    %v348 = vmul.f32 %v346, %v280
    %v351 = vrot.slane %v347, 4
    %v352 = vrot.slane %v348, 4
    %v353 = vsel %vm333, %v351, %v352
    %v356 = vadd.f32 %v343, %v353
    %v357 = vadd.f32 %v344, %v352
    %v358 = vadd.f32 %v339, %v356
    %v359 = vadd.f32 %v340, %v357
    %s360 = sld [smem:[#allocation2 + $0x20]]
    %v361 = vstv %s360
    %v362 = vmul.f32 %v361, %v321
    %v363 = vmul.f32 %v361, %v322
    %s364 = sld [smem:[#allocation2 + $0x21]]
    %v365 = vstv %s364
    %v366 = vmul.f32 %v365, %v321
    %v367 = vmul.f32 %v365, %v322
    %v370 = vrot.slane %v366, 4
    %v371 = vrot.slane %v367, 4
    %v372 = vsel %vm333, %v370, %v371
    %v375 = vadd.f32 %v362, %v372
    %v376 = vadd.f32 %v363, %v371
    %v377 = vadd.f32 %v358, %v375
    %v378 = vadd.f32 %v359, %v376
    %s379 = sld [smem:[#allocation2 + $0x29]]
    %v380 = vstv %s379
    %v381 = vadd.f32 %v377, %v380
    %v382 = vadd.f32 %v378, %v380
    %v383 = vmax.f32 %v381, 0.0
    %v384 = vmax.f32 %v382, 0.0
    %s385 = sld [smem:[#allocation2 + $0x22]]
    %v386 = vstv %s385
    %v387 = vmul.f32 %v386, %v383
    %s388 = sld [smem:[#allocation2 + $0x23]]
    %v389 = vstv %s388
    %v390 = vmul.f32 %v389, %v384
    %v391 = vadd.f32 %v387, %v390
    %s392 = sld [smem:[#allocation2 + $0x2a]]
    %v393 = vstv %s392
    %v394 = vadd.f32 %v391, %v393
    %395 = vst [vmem:[%s2] sm:$0x1] %v394
    // Predicated region
    $region14: #{dilated_net_forward.1} parent=1 // pred_check
      _
    $region15: #{dilated_net_forward.1} parent=1 // pred_check_branch
      %397 = sbr.rel (0) target = $region17
    $region16: #{dilated_net_forward.1} parent=1 // pred_region
      _
    $region17: #{dilated_net_forward.1} parent=1 // pred_fallthru
      _
    // Predicated region
    $region18: #{dilated_net_forward.1} parent=1 // pred_check
      _
    $region19: #{dilated_net_forward.1} parent=1 // pred_check_branch
      %399 = sbr.rel (0) target = $region21
    $region20: #{dilated_net_forward.1} parent=1 // pred_region
      _
    $region21: #{dilated_net_forward.1} parent=1 // pred_fallthru
      _
    %400 = vsyncpa [#allocation3], 1

</llo_original>
